<compile_context>
chip_gen: v7x
topology: tpu7x:2x2x1
jax: 0.10.0
libtpu: 0.0.40
codegen_flags: <defaults>
</compile_context>

<pallas_src>
import jax
import jax.numpy as jnp
from jax.experimental import pallas as pl
from jax.experimental.pallas import tpu as pltpu

N_NODES = 7
F_IN = 16
F_H = 8
IN_FLAT = N_NODES * F_IN      # 112
IN_PAD = 128                  # 112 zero-padded to a full lane width
FLAT = N_NODES * F_H          # 56
H_LIN = 24
BT_MAX = 8192                 # batch-tile cap (VMEM-safe on v5e/v6e/v7x)


def gcn_kernel(x_ref, wc1_ref, b1_ref, wc2_ref, b2_ref, w3_ref, b3_ref,
               w4_ref, b4_ref, out_ref):
    # One grid step == one tile of BT graphs.  Three bf16 GEMMs with f32
    # accumulation + a VPU lane reduction for the final Linear(24 -> 1).
    x = x_ref[...]                                                  # (BT,128) bf16

    # GCN layer 1 (adjacency folded into the weight): relu(X @ kron(A.T,W1) + b1)
    h1 = jnp.maximum(
        jnp.dot(x, wc1_ref[...], preferred_element_type=jnp.float32)
        + b1_ref[...], 0.0)                                         # (BT,56) f32

    # GCN layer 2
    h2 = jnp.maximum(
        jnp.dot(h1.astype(jnp.bfloat16), wc2_ref[...],
                preferred_element_type=jnp.float32)
        + b2_ref[...], 0.0)                                         # (BT,56) f32

    # Linear(56 -> 24) + ReLU  (flatten is node-major, i.e. identity)
    h3 = jnp.maximum(
        jnp.dot(h2.astype(jnp.bfloat16), w3_ref[...],
                preferred_element_type=jnp.float32)
        + b3_ref[...], 0.0)                                         # (BT,24) f32

    # Linear(24 -> 1): keep it off the MXU (N=1 matmul wastes pushes);
    # VPU multiply + lane reduction is effectively free here.
    y = jnp.sum(h3 * w4_ref[...], axis=-1, keepdims=True) + b4_ref[...]
    out_ref[...] = y.astype(out_ref.dtype)                          # (BT,1)


def normalized_adj(edge_index, n):
    # GCNConv normalization: A <- A + I, deg = in-degree, Ahat = D^-1/2 A D^-1/2.
    src = edge_index[0]
    dst = edge_index[1]
    a = jnp.zeros((n, n), jnp.float32).at[dst, src].add(1.0)
    a = a + jnp.eye(n, dtype=jnp.float32)
    deg = a.sum(axis=1)
    dinv = jnp.where(deg > 0, 1.0 / jnp.sqrt(deg), 0.0)
    return dinv[:, None] * a * dinv[None, :]


def init_params(key):
    ks = jax.random.split(key, 6)

    def u(k, shape, fan_in):
        s = 1.0 / (fan_in ** 0.5)
        return jax.random.uniform(k, shape, jnp.float32, -s, s)

    w1 = u(ks[0], (F_IN, F_H), F_IN)          # GCNConv(16, 8) weight
    b1 = jnp.zeros((F_H,), jnp.float32)       # GCNConv bias init = zeros
    w2 = u(ks[1], (F_H, F_H), F_H)            # GCNConv(8, 8) weight
    b2 = jnp.zeros((F_H,), jnp.float32)
    w3 = u(ks[2], (FLAT, H_LIN), FLAT)        # Linear(56, 24), stored transposed
    b3 = u(ks[3], (H_LIN,), FLAT)
    w4 = u(ks[4], (H_LIN, 1), H_LIN)          # Linear(24, 1), stored transposed
    b4 = u(ks[5], (1,), H_LIN)
    return (w1, b1, w2, b2, w3, b3, w4, b4)


def _round_up(x, m):
    return ((x + m - 1) // m) * m


def _batch_tiling(b):
    # Pick the batch tile BT so that:
    #  * BT is sublane-aligned (multiple of 8),
    #  * there are ALWAYS >= 2 grid steps (v7x has 2 TensorCores; grid=(1,)
    #    would idle one of them regardless of dimension_semantics),
    #  * BT is as large as VMEM comfortably allows (<= 8192) so the ~0.35 us
    #    per-grid-step overhead is amortized to <10% of step time.
    if b <= 2 * BT_MAX:
        bt = max(8, _round_up((b + 1) // 2, 8))
    else:
        bt = BT_MAX
    b_pad = _round_up(b, bt)
    if b_pad // bt < 2:
        b_pad = 2 * bt
    return bt, b_pad


def gcn_forward(x1, edge_index, params):
    x = x1.reshape(-1, IN_FLAT).astype(jnp.float32)       # (B, 112), node-major
    B = x.shape[0]
    adj = normalized_adj(edge_index, N_NODES)
    w1, b1, w2, b2, w3, b3, w4, b4 = params

    # Fold the adjacency into the GCN weights (tiny wrapper-side kron):
    #   adj @ (X @ W) == X_flat @ kron(adj.T, W)   with node-major flattening.
    wc1 = jnp.kron(adj.T, w1)                              # (112, 56)
    wc2 = jnp.kron(adj.T, w2)                              # (56, 56)
    b1t = jnp.tile(b1, N_NODES).reshape(1, FLAT)
    b2t = jnp.tile(b2, N_NODES).reshape(1, FLAT)

    bt, b_pad = _batch_tiling(B)
    grid = (b_pad // bt,)

    # Zero-pad: batch to a tile multiple, input features 112 -> 128 so the x
    # block is lane-dense and K is a clean MXU multiple.  Padded K rows of wc1
    # are zeros, so results are unchanged; padded batch rows are sliced off.
    x = jnp.pad(x, ((0, b_pad - B), (0, IN_PAD - IN_FLAT)))
    wc1 = jnp.pad(wc1, ((0, IN_PAD - IN_FLAT), (0, 0)))

    # bf16 for everything streamed into the MXU; f32 accumulation in-kernel.
    x_bf = x.astype(jnp.bfloat16)
    wc1_bf = wc1.astype(jnp.bfloat16)
    wc2_bf = wc2.astype(jnp.bfloat16)
    w3_bf = w3.astype(jnp.bfloat16)

    flops = 2 * b_pad * (IN_PAD * FLAT + FLAT * FLAT + FLAT * H_LIN + H_LIN)
    bytes_accessed = (2 * b_pad * IN_PAD + 4 * b_pad
                      + 2 * (IN_PAD * FLAT + FLAT * FLAT + FLAT * H_LIN)
                      + 4 * (2 * FLAT + 2 * H_LIN + 1))

    out = pl.pallas_call(
        gcn_kernel,
        out_shape=jax.ShapeDtypeStruct((b_pad, 1), jnp.float32),
        grid=grid,
        in_specs=[
            # x tile: the only per-step-varying input.
            # (If a profile shows exposed DMA, add pipeline_mode=pl.Buffered(3).)
            pl.BlockSpec((bt, IN_PAD), lambda b: (b, 0)),
            pl.BlockSpec((IN_PAD, FLAT), lambda b: (0, 0)),    # kron(A.T, W1) (padded)
            pl.BlockSpec((1, FLAT), lambda b: (0, 0)),         # b1 tiled
            pl.BlockSpec((FLAT, FLAT), lambda b: (0, 0)),      # kron(A.T, W2)
            pl.BlockSpec((1, FLAT), lambda b: (0, 0)),         # b2 tiled
            pl.BlockSpec((FLAT, H_LIN), lambda b: (0, 0)),     # W3
            pl.BlockSpec((1, H_LIN), lambda b: (0, 0)),        # b3
            pl.BlockSpec((1, H_LIN), lambda b: (0, 0)),        # W4 as row
            pl.BlockSpec((1, 1), lambda b: (0, 0)),            # b4
        ],
        out_specs=pl.BlockSpec((bt, 1), lambda b: (b, 0)),     # per-step block
        compiler_params=pltpu.CompilerParams(
            dimension_semantics=("parallel",),
            # Big tiles + the lane-padded (BT,1) output block would trip
            # v5e's 16 MiB scoped-VMEM default; be explicit (safe on all gens).
            vmem_limit_bytes=48 * 1024 * 1024),
        cost_estimate=pl.CostEstimate(
            flops=flops, transcendentals=0, bytes_accessed=bytes_accessed),
    )(x_bf, wc1_bf, b1t, wc2_bf, b2t, w3_bf,
      b3.reshape(1, H_LIN), w4.reshape(1, H_LIN), b4.reshape(1, 1))
    return out[:B]


def gcn_reference(x1, edge_index, params):
    x = x1.reshape(-1, N_NODES, F_IN).astype(jnp.float32)
    adj = normalized_adj(edge_index, N_NODES)
    w1, b1, w2, b2, w3, b3, w4, b4 = params
    h1 = jax.nn.relu(jnp.einsum('ij,bjf->bif', adj, x @ w1) + b1)
    h2 = jax.nn.relu(jnp.einsum('ij,bjf->bif', adj, h1 @ w2) + b2)
    flat = h2.reshape(x.shape[0], FLAT)
    h3 = jax.nn.relu(flat @ w3 + b3)
    return h3 @ w4 + b4


if __name__ == "__main__":
    key = jax.random.PRNGKey(0)
    k_x, k_p = jax.random.split(key)

    B = 2
    x1 = jax.random.normal(k_x, (B, N_NODES * F_IN), dtype=jnp.float32)  # (2, 112)

    # Symmetric ring graph over 7 nodes -> edge_index of shape (2, 14).
    ring = [(i, (i + 1) % N_NODES) for i in range(N_NODES)]
    edges = ring + [(j, i) for (i, j) in ring]
    edge_index = jnp.array(list(zip(*edges)), dtype=jnp.int32)

    params = init_params(k_p)

    out = gcn_forward(x1, edge_index, params)
    out = jax.block_until_ready(out)

    ref = gcn_reference(x1, edge_index, params)
    assert out.shape == (B, 1), out.shape
    assert jnp.allclose(out, ref, rtol=5e-2, atol=5e-2), (out, ref)

    print("KERNEL_OK")
</pallas_src>

<mosaic_0001>
module attributes {stable_mosaic.version = 11 : i64} {
  func.func @gcn_kernel(%arg0: i32, %arg1: memref<8x128xbf16, #tpu.memory_space<vmem>>, %arg2: memref<128x56xbf16, #tpu.memory_space<vmem>>, %arg3: memref<1x56xf32, #tpu.memory_space<vmem>>, %arg4: memref<56x56xbf16, #tpu.memory_space<vmem>>, %arg5: memref<1x56xf32, #tpu.memory_space<vmem>>, %arg6: memref<56x24xbf16, #tpu.memory_space<vmem>>, %arg7: memref<1x24xf32, #tpu.memory_space<vmem>>, %arg8: memref<1x24xf32, #tpu.memory_space<vmem>>, %arg9: memref<1x1xf32, #tpu.memory_space<vmem>>, %arg10: memref<8x1xf32, #tpu.memory_space<vmem>>) attributes {dimension_semantics = [#tpu.dimension_semantics<parallel>], iteration_bounds = array<i64: 2>, scalar_prefetch = 0 : i64, scratch_operands = 0 : i64, tpu.core_type = #tpu.core_type<tc>, window_params = [{transform_indices = @transform_0, window_bounds = array<i64: 8, 128>}, {pipeline_mode = #tpu.pipeline_mode<synchronous>, transform_indices = @transform_1, window_bounds = array<i64: 128, 56>}, {pipeline_mode = #tpu.pipeline_mode<synchronous>, transform_indices = @transform_2, window_bounds = array<i64: 1, 56>}, {pipeline_mode = #tpu.pipeline_mode<synchronous>, transform_indices = @transform_3, window_bounds = array<i64: 56, 56>}, {pipeline_mode = #tpu.pipeline_mode<synchronous>, transform_indices = @transform_4, window_bounds = array<i64: 1, 56>}, {pipeline_mode = #tpu.pipeline_mode<synchronous>, transform_indices = @transform_5, window_bounds = array<i64: 56, 24>}, {pipeline_mode = #tpu.pipeline_mode<synchronous>, transform_indices = @transform_6, window_bounds = array<i64: 1, 24>}, {pipeline_mode = #tpu.pipeline_mode<synchronous>, transform_indices = @transform_7, window_bounds = array<i64: 1, 24>}, {pipeline_mode = #tpu.pipeline_mode<synchronous>, transform_indices = @transform_8, window_bounds = array<i64: 1, 1>}, {transform_indices = @transform_9, window_bounds = array<i64: 8, 1>}]} {
    %c0 = arith.constant 0 : index
    %c0_0 = arith.constant 0 : index
    %0 = vector.load %arg1[%c0, %c0_0] : memref<8x128xbf16, #tpu.memory_space<vmem>>, vector<8x128xbf16>
    %c0_1 = arith.constant 0 : index
    %c0_2 = arith.constant 0 : index
    %1 = vector.load %arg2[%c0_1, %c0_2] : memref<128x56xbf16, #tpu.memory_space<vmem>>, vector<128x56xbf16>
    %cst = arith.constant dense<0.000000e+00> : vector<8x56xf32>
    %2 = tpu.matmul %0, %1, %cst {dimension_numbers = #tpu.dot_dimension_numbers<[1], [0], [0], [1], [0, 0, 1, 1], [], []>} : vector<8x128xbf16>, vector<128x56xbf16>, vector<8x56xf32> -> vector<8x56xf32>
    %c0_3 = arith.constant 0 : index
    %c0_4 = arith.constant 0 : index
    %3 = vector.load %arg3[%c0_3, %c0_4] : memref<1x56xf32, #tpu.memory_space<vmem>>, vector<1x56xf32>
    %4 = vector.broadcast %3 : vector<1x56xf32> to vector<8x56xf32>
    %5 = arith.addf %2, %4 : vector<8x56xf32>
    %cst_5 = arith.constant 0.000000e+00 : f32
    %6 = vector.broadcast %cst_5 : f32 to vector<8x56xf32>
    %7 = arith.maximumf %5, %6 : vector<8x56xf32>
    %8 = arith.truncf %7 : vector<8x56xf32> to vector<8x56xbf16>
    %c0_6 = arith.constant 0 : index
    %c0_7 = arith.constant 0 : index
    %9 = vector.load %arg4[%c0_6, %c0_7] : memref<56x56xbf16, #tpu.memory_space<vmem>>, vector<56x56xbf16>
    %cst_8 = arith.constant dense<0.000000e+00> : vector<8x56xf32>
    %10 = tpu.matmul %8, %9, %cst_8 {dimension_numbers = #tpu.dot_dimension_numbers<[1], [0], [0], [1], [0, 0, 1, 1], [], []>} : vector<8x56xbf16>, vector<56x56xbf16>, vector<8x56xf32> -> vector<8x56xf32>
    %c0_9 = arith.constant 0 : index
    %c0_10 = arith.constant 0 : index
    %11 = vector.load %arg5[%c0_9, %c0_10] : memref<1x56xf32, #tpu.memory_space<vmem>>, vector<1x56xf32>
    %12 = vector.broadcast %11 : vector<1x56xf32> to vector<8x56xf32>
    %13 = arith.addf %10, %12 : vector<8x56xf32>
    %cst_11 = arith.constant 0.000000e+00 : f32
    %14 = vector.broadcast %cst_11 : f32 to vector<8x56xf32>
    %15 = arith.maximumf %13, %14 : vector<8x56xf32>
    %16 = arith.truncf %15 : vector<8x56xf32> to vector<8x56xbf16>
    %c0_12 = arith.constant 0 : index
    %c0_13 = arith.constant 0 : index
    %17 = vector.load %arg6[%c0_12, %c0_13] : memref<56x24xbf16, #tpu.memory_space<vmem>>, vector<56x24xbf16>
    %cst_14 = arith.constant dense<0.000000e+00> : vector<8x24xf32>
    %18 = tpu.matmul %16, %17, %cst_14 {dimension_numbers = #tpu.dot_dimension_numbers<[1], [0], [0], [1], [0, 0, 1, 1], [], []>} : vector<8x56xbf16>, vector<56x24xbf16>, vector<8x24xf32> -> vector<8x24xf32>
    %c0_15 = arith.constant 0 : index
    %c0_16 = arith.constant 0 : index
    %19 = vector.load %arg7[%c0_15, %c0_16] : memref<1x24xf32, #tpu.memory_space<vmem>>, vector<1x24xf32>
    %20 = vector.broadcast %19 : vector<1x24xf32> to vector<8x24xf32>
    %21 = arith.addf %18, %20 : vector<8x24xf32>
    %cst_17 = arith.constant 0.000000e+00 : f32
    %22 = vector.broadcast %cst_17 : f32 to vector<8x24xf32>
    %23 = arith.maximumf %21, %22 : vector<8x24xf32>
    %c0_18 = arith.constant 0 : index
    %c0_19 = arith.constant 0 : index
    %24 = vector.load %arg8[%c0_18, %c0_19] : memref<1x24xf32, #tpu.memory_space<vmem>>, vector<1x24xf32>
    %25 = vector.broadcast %24 : vector<1x24xf32> to vector<8x24xf32>
    %26 = arith.mulf %23, %25 : vector<8x24xf32>
    %cst_20 = arith.constant dense<0.000000e+00> : vector<8xf32>
    %27 = vector.multi_reduction <add>, %26, %cst_20 [1] : vector<8x24xf32> to vector<8xf32>
    %28 = vector.shape_cast %27 : vector<8xf32> to vector<8x1xf32>
    %c0_21 = arith.constant 0 : index
    %c0_22 = arith.constant 0 : index
    %29 = vector.load %arg9[%c0_21, %c0_22] : memref<1x1xf32, #tpu.memory_space<vmem>>, vector<1x1xf32>
    %30 = vector.broadcast %29 : vector<1x1xf32> to vector<8x1xf32>
    %31 = arith.addf %28, %30 : vector<8x1xf32>
    %c0_23 = arith.constant 0 : index
    %c0_24 = arith.constant 0 : index
    %32 = vector.load %arg10[%c0_23, %c0_24] : memref<8x1xf32, #tpu.memory_space<vmem>>, vector<8x1xf32>
    tpu.vector_store %arg10[%c0_23, %c0_24], %31 {strides = array<i32>} : memref<8x1xf32, #tpu.memory_space<vmem>>, vector<8x1xf32>,
    return
  }
  func.func @transform_0(%arg0: i32) -> (i32, i32) {
    %c0_i32 = arith.constant 0 : i32
    %c0_i32_0 = arith.constant 0 : i32
    return %arg0, %c0_i32 : i32, i32
  }
  func.func @transform_1(%arg0: i32) -> (i32, i32) {
    %c0_i32 = arith.constant 0 : i32
    %c0_i32_0 = arith.constant 0 : i32
    %c0_i32_1 = arith.constant 0 : i32
    return %c0_i32, %c0_i32_0 : i32, i32
  }
  func.func @transform_2(%arg0: i32) -> (i32, i32) {
    %c0_i32 = arith.constant 0 : i32
    %c0_i32_0 = arith.constant 0 : i32
    %c0_i32_1 = arith.constant 0 : i32
    return %c0_i32, %c0_i32_0 : i32, i32
  }
  func.func @transform_3(%arg0: i32) -> (i32, i32) {
    %c0_i32 = arith.constant 0 : i32
    %c0_i32_0 = arith.constant 0 : i32
    %c0_i32_1 = arith.constant 0 : i32
    return %c0_i32, %c0_i32_0 : i32, i32
  }
  func.func @transform_4(%arg0: i32) -> (i32, i32) {
    %c0_i32 = arith.constant 0 : i32
    %c0_i32_0 = arith.constant 0 : i32
    %c0_i32_1 = arith.constant 0 : i32
    return %c0_i32, %c0_i32_0 : i32, i32
  }
  func.func @transform_5(%arg0: i32) -> (i32, i32) {
    %c0_i32 = arith.constant 0 : i32
    %c0_i32_0 = arith.constant 0 : i32
    %c0_i32_1 = arith.constant 0 : i32
    return %c0_i32, %c0_i32_0 : i32, i32
  }
  func.func @transform_6(%arg0: i32) -> (i32, i32) {
    %c0_i32 = arith.constant 0 : i32
    %c0_i32_0 = arith.constant 0 : i32
    %c0_i32_1 = arith.constant 0 : i32
    return %c0_i32, %c0_i32_0 : i32, i32
  }
  func.func @transform_7(%arg0: i32) -> (i32, i32) {
    %c0_i32 = arith.constant 0 : i32
    %c0_i32_0 = arith.constant 0 : i32
    %c0_i32_1 = arith.constant 0 : i32
    return %c0_i32, %c0_i32_0 : i32, i32
  }
  func.func @transform_8(%arg0: i32) -> (i32, i32) {
    %c0_i32 = arith.constant 0 : i32
    %c0_i32_0 = arith.constant 0 : i32
    %c0_i32_1 = arith.constant 0 : i32
    return %c0_i32, %c0_i32_0 : i32, i32
  }
  func.func @transform_9(%arg0: i32) -> (i32, i32) {
    %c0_i32 = arith.constant 0 : i32
    %c0_i32_0 = arith.constant 0 : i32
    return %arg0, %c0_i32 : i32, i32
  }
}

</mosaic_0001>

<llo_original>
// kernel: tpu_custom_call.1
$region0: #{tpu_custom_call.1}
  #allocation0 [shape = 'u32[]', space=smem, size = 0x4, offset = 0x4, fixed_abs, tag = 'smem constant byte address 0x4 - core index']
  #allocation1 [shape = 'u32[144,128]{1,0:T(1,128)}', space=vmem, size = 0x12000, scoped, tag = 'internal scratch']
  #allocation2 [shape = 'f32[1,1]{1,0:T(1,128)S(1)}', space=vmem, size = 0x200, scoped, tag = 'scoped memory for tpu_custom_call.1']
  %s0 = inlined_call_operand.vmem [shape: bf16[16,128], index: 0, kind: input, shape index: {}]
  %s1 = inlined_call_operand.vmem [shape: bf16[128,56], index: 1, kind: input, shape index: {}]
  %s2 = inlined_call_operand.vmem [shape: f32[1,56], index: 2, kind: input, shape index: {}]
  %s3 = inlined_call_operand.vmem [shape: bf16[56,56], index: 3, kind: input, shape index: {}]
  %s4 = inlined_call_operand.vmem [shape: f32[1,56], index: 4, kind: input, shape index: {}]
  %s5 = inlined_call_operand.vmem [shape: bf16[56,24], index: 5, kind: input, shape index: {}]
  %s6 = inlined_call_operand.vmem [shape: f32[1,24], index: 6, kind: input, shape index: {}]
  %s7 = inlined_call_operand.vmem [shape: f32[1,24], index: 7, kind: input, shape index: {}]
  %s8 = inlined_call_operand.<no memory space> [shape: f32[1,1], index: 8, kind: input, shape index: {}]
  %s9 = inlined_call_operand.vmem [shape: f32[16,1], index: 9, kind: output, shape index: {}]
  %s10 = sld [smem:[#allocation0]]
  $region69: #{tpu_custom_call.1} parent=0
    _
  %s12 = ssub.s32 1, %s10
  %s13 = scalar_select 0, %s12, %s10
  %v14 = vstv %s8
  %15 = vst [vmem:[#allocation2] sm:$0x1] %v14
  loop: start=0, step=1, limit=4
  $region2: #{tpu_custom_call.1} parent=0 // loop_pre_header
    _
  $region3: #{tpu_custom_call.1} parent=0 // loop_header
    %s17 = sphi 0, %s21
    %p18 = scmp.ge.s32.totalorder %s17, 4
    %s27 = sphi 0, %s29
    %s30 = sphi 0, %s27
    %s31 = sphi 0, %s30
    %s47 = sphi 0, %s31
    %s51 = sphi 0, %s51
    %s53 = sphi 0, %s51
    %s54 = sphi 0, %s53
    %s68 = sphi 0, %s54
    %s72 = sphi 0, %s72
    %s74 = sphi 0, %s72
    %s75 = sphi 0, %s74
    %s89 = sphi 0, %s75
    %s93 = sphi 0, %s93
    %s95 = sphi 0, %s93
    %s96 = sphi 0, %s95
    %s110 = sphi 0, %s96
    %s114 = sphi 0, %s114
    %s116 = sphi 0, %s114
    %s117 = sphi 0, %s116
    %s131 = sphi 0, %s117
    %s135 = sphi 0, %s135
    %s137 = sphi 0, %s135
    %s138 = sphi 0, %s137
    %s152 = sphi 0, %s138
    %s156 = sphi 0, %s156
    %s158 = sphi 0, %s156
    %s159 = sphi 0, %s158
    %s173 = sphi 0, %s159
    %s177 = sphi 0, %s177
    %s179 = sphi 0, %s177
    %s180 = sphi 0, %s179
    %s194 = sphi 0, %s180
    %s198 = sphi 0, %s198
    %s200 = sphi 0, %s198
    %s201 = sphi 0, %s200
    %s215 = sphi 0, %s201
    %s221 = sphi 0, %s223
    %s224 = sphi 0, %s221
    %s225 = sphi 0, %s224
    %s241 = sphi 0, %s225
  $region4: #{tpu_custom_call.1} parent=0 // loop_header_branch
    %20 = sbr.rel (%p18) target = $region8
  $region5: #{tpu_custom_call.1} parent=0 // loop_body
    %s22 = ssub.s32 %s17, 1
    %s23 = ssub.s32 %s17, 2
    %s24 = sadd.s32 %s17, 1
    %s25 = ssub.s32 %s17, %s24
    %p26 = scmp.eq.s32.totalorder %s25, 0
    %s28 = sadd.s32 %s27, 1
    %s29 = scalar_select %p26, %s27, %s28
    %p32 = pneg %p26
    %p33 = scmp.eq.s32.totalorder %s17, 1
    %p34 = por %p32, %p33
    %p35 = scmp.ne.s32.totalorder %s27, %s30
    %p36 = scmp.eq.s32.totalorder %s17, 0
    %p37 = por %p35, %p36
    %p38 = scmp.ne.s32.totalorder %s27, %s30
    %p39 = scmp.eq.s32.totalorder %s22, 1
    %p40 = por %p38, %p39
    %p41 = scmp.ne.s32.totalorder %s30, %s31
    %p42 = scmp.eq.s32.totalorder %s22, 0
    %p43 = por %p41, %p42
    %p44 = scmp.ne.s32.totalorder %s30, %s31
    %p45 = scmp.eq.s32.totalorder %s23, 1
    %p46 = por %p44, %p45
    %p48 = scmp.ne.s32.totalorder %s31, %s47
    %p49 = scmp.eq.s32.totalorder %s23, 0
    %p50 = por %p48, %p49
    %s52 = sadd.s32 %s51, 1
    %p55 = scmp.eq.s32.totalorder %s17, 1
    %p56 = scmp.ne.s32.totalorder %s51, %s53
    %p57 = scmp.eq.s32.totalorder %s17, 0
    %p58 = por %p56, %p57
    %p59 = scmp.ne.s32.totalorder %s51, %s53
    %p60 = scmp.eq.s32.totalorder %s22, 1
    %p61 = por %p59, %p60
    %p62 = scmp.ne.s32.totalorder %s53, %s54
    %p63 = scmp.eq.s32.totalorder %s22, 0
    %p64 = por %p62, %p63
    %p65 = scmp.ne.s32.totalorder %s53, %s54
    %p66 = scmp.eq.s32.totalorder %s23, 1
    %p67 = por %p65, %p66
    %p69 = scmp.ne.s32.totalorder %s54, %s68
    %p70 = scmp.eq.s32.totalorder %s23, 0
    %p71 = por %p69, %p70
    %s73 = sadd.s32 %s72, 1
    %p76 = scmp.eq.s32.totalorder %s17, 1
    %p77 = scmp.ne.s32.totalorder %s72, %s74
    %p78 = scmp.eq.s32.totalorder %s17, 0
    %p79 = por %p77, %p78
    %p80 = scmp.ne.s32.totalorder %s72, %s74
    %p81 = scmp.eq.s32.totalorder %s22, 1
    %p82 = por %p80, %p81
    %p83 = scmp.ne.s32.totalorder %s74, %s75
    %p84 = scmp.eq.s32.totalorder %s22, 0
    %p85 = por %p83, %p84
    %p86 = scmp.ne.s32.totalorder %s74, %s75
    %p87 = scmp.eq.s32.totalorder %s23, 1
    %p88 = por %p86, %p87
    %p90 = scmp.ne.s32.totalorder %s75, %s89
    %p91 = scmp.eq.s32.totalorder %s23, 0
    %p92 = por %p90, %p91
    %s94 = sadd.s32 %s93, 1
    %p97 = scmp.eq.s32.totalorder %s17, 1
    %p98 = scmp.ne.s32.totalorder %s93, %s95
    %p99 = scmp.eq.s32.totalorder %s17, 0
    %p100 = por %p98, %p99
    %p101 = scmp.ne.s32.totalorder %s93, %s95
    %p102 = scmp.eq.s32.totalorder %s22, 1
    %p103 = por %p101, %p102
    %p104 = scmp.ne.s32.totalorder %s95, %s96
    %p105 = scmp.eq.s32.totalorder %s22, 0
    %p106 = por %p104, %p105
    %p107 = scmp.ne.s32.totalorder %s95, %s96
    %p108 = scmp.eq.s32.totalorder %s23, 1
    %p109 = por %p107, %p108
    %p111 = scmp.ne.s32.totalorder %s96, %s110
    %p112 = scmp.eq.s32.totalorder %s23, 0
    %p113 = por %p111, %p112
    %s115 = sadd.s32 %s114, 1
    %p118 = scmp.eq.s32.totalorder %s17, 1
    %p119 = scmp.ne.s32.totalorder %s114, %s116
    %p120 = scmp.eq.s32.totalorder %s17, 0
    %p121 = por %p119, %p120
    %p122 = scmp.ne.s32.totalorder %s114, %s116
    %p123 = scmp.eq.s32.totalorder %s22, 1
    %p124 = por %p122, %p123
    %p125 = scmp.ne.s32.totalorder %s116, %s117
    %p126 = scmp.eq.s32.totalorder %s22, 0
    %p127 = por %p125, %p126
    %p128 = scmp.ne.s32.totalorder %s116, %s117
    %p129 = scmp.eq.s32.totalorder %s23, 1
    %p130 = por %p128, %p129
    %p132 = scmp.ne.s32.totalorder %s117, %s131
    %p133 = scmp.eq.s32.totalorder %s23, 0
    %p134 = por %p132, %p133
    %s136 = sadd.s32 %s135, 1
    %p139 = scmp.eq.s32.totalorder %s17, 1
    %p140 = scmp.ne.s32.totalorder %s135, %s137
    %p141 = scmp.eq.s32.totalorder %s17, 0
    %p142 = por %p140, %p141
    %p143 = scmp.ne.s32.totalorder %s135, %s137
    %p144 = scmp.eq.s32.totalorder %s22, 1
    %p145 = por %p143, %p144
    %p146 = scmp.ne.s32.totalorder %s137, %s138
    %p147 = scmp.eq.s32.totalorder %s22, 0
    %p148 = por %p146, %p147
    %p149 = scmp.ne.s32.totalorder %s137, %s138
    %p150 = scmp.eq.s32.totalorder %s23, 1
    %p151 = por %p149, %p150
    %p153 = scmp.ne.s32.totalorder %s138, %s152
    %p154 = scmp.eq.s32.totalorder %s23, 0
    %p155 = por %p153, %p154
    %s157 = sadd.s32 %s156, 1
    %p160 = scmp.eq.s32.totalorder %s17, 1
    %p161 = scmp.ne.s32.totalorder %s156, %s158
    %p162 = scmp.eq.s32.totalorder %s17, 0
    %p163 = por %p161, %p162
    %p164 = scmp.ne.s32.totalorder %s156, %s158
    %p165 = scmp.eq.s32.totalorder %s22, 1
    %p166 = por %p164, %p165
    %p167 = scmp.ne.s32.totalorder %s158, %s159
    %p168 = scmp.eq.s32.totalorder %s22, 0
    %p169 = por %p167, %p168
    %p170 = scmp.ne.s32.totalorder %s158, %s159
    %p171 = scmp.eq.s32.totalorder %s23, 1
    %p172 = por %p170, %p171
    %p174 = scmp.ne.s32.totalorder %s159, %s173
    %p175 = scmp.eq.s32.totalorder %s23, 0
    %p176 = por %p174, %p175
    %s178 = sadd.s32 %s177, 1
    %p181 = scmp.eq.s32.totalorder %s17, 1
    %p182 = scmp.ne.s32.totalorder %s177, %s179
    %p183 = scmp.eq.s32.totalorder %s17, 0
    %p184 = por %p182, %p183
    %p185 = scmp.ne.s32.totalorder %s177, %s179
    %p186 = scmp.eq.s32.totalorder %s22, 1
    %p187 = por %p185, %p186
    %p188 = scmp.ne.s32.totalorder %s179, %s180
    %p189 = scmp.eq.s32.totalorder %s22, 0
    %p190 = por %p188, %p189
    %p191 = scmp.ne.s32.totalorder %s179, %s180
    %p192 = scmp.eq.s32.totalorder %s23, 1
    %p193 = por %p191, %p192
    %p195 = scmp.ne.s32.totalorder %s180, %s194
    %p196 = scmp.eq.s32.totalorder %s23, 0
    %p197 = por %p195, %p196
    %s199 = sadd.s32 %s198, 1
    %p202 = scmp.eq.s32.totalorder %s17, 1
    %p203 = scmp.ne.s32.totalorder %s198, %s200
    %p204 = scmp.eq.s32.totalorder %s17, 0
    %p205 = por %p203, %p204
    %p206 = scmp.ne.s32.totalorder %s198, %s200
    %p207 = scmp.eq.s32.totalorder %s22, 1
    %p208 = por %p206, %p207
    %p209 = scmp.ne.s32.totalorder %s200, %s201
    %p210 = scmp.eq.s32.totalorder %s22, 0
    %p211 = por %p209, %p210
    %p212 = scmp.ne.s32.totalorder %s200, %s201
    %p213 = scmp.eq.s32.totalorder %s23, 1
    %p214 = por %p212, %p213
    %p216 = scmp.ne.s32.totalorder %s201, %s215
    %p217 = scmp.eq.s32.totalorder %s23, 0
    %p218 = por %p216, %p217
    %s219 = ssub.s32 %s17, %s24
    %p220 = scmp.eq.s32.totalorder %s219, 0
    %s222 = sadd.s32 %s221, 1
    %s223 = scalar_select %p220, %s221, %s222
    %p226 = pneg %p220
    %p227 = scmp.eq.s32.totalorder %s17, 1
    %p228 = por %p226, %p227
    %p229 = scmp.ne.s32.totalorder %s221, %s224
    %p230 = scmp.eq.s32.totalorder %s17, 0
    %p231 = por %p229, %p230
    %p232 = scmp.ne.s32.totalorder %s221, %s224
    %p233 = scmp.eq.s32.totalorder %s22, 1
    %p234 = por %p232, %p233
    %p235 = scmp.ne.s32.totalorder %s224, %s225
    %p236 = scmp.eq.s32.totalorder %s22, 0
    %p237 = por %p235, %p236
    %p238 = scmp.ne.s32.totalorder %s224, %s225
    %p239 = scmp.eq.s32.totalorder %s23, 1
    %p240 = por %p238, %p239
    %p242 = scmp.ne.s32.totalorder %s225, %s241
    %p243 = scmp.eq.s32.totalorder %s23, 0
    %p244 = por %p242, %p243
    %p245 = scmp.le.s32.totalorder 1, %s17
    %p246 = scmp.lt.s32.totalorder %s17, 3
    %p247 = pnand %p245, %p246
    %p248 = pneg %p247
    // Predicated region
    $region9: #{tpu_custom_call.1} parent=5 // pred_check
      _
    $region10: #{tpu_custom_call.1} parent=5 // pred_check_branch
      %250 = sbr.rel (%p247) target = $region12
    $region11: #{tpu_custom_call.1} parent=5 // pred_region
      %s251 = ssub.s32 %s17, 1
      // Predicated region
      $region13: #{tpu_custom_call.1} parent=11 // pred_check
        %p252 = pneg %p64
      $region14: #{tpu_custom_call.1} parent=11 // pred_check_branch
        %254 = sbr.rel (%p252) target = $region16
      $region15: #{tpu_custom_call.1} parent=11 // pred_region
        _
      $region16: #{tpu_custom_call.1} parent=11 // pred_fallthru
        _
      // Predicated region
      $region17: #{tpu_custom_call.1} parent=11 // pred_check
        %p255 = pneg %p85
      $region18: #{tpu_custom_call.1} parent=11 // pred_check_branch
        %257 = sbr.rel (%p255) target = $region20
      $region19: #{tpu_custom_call.1} parent=11 // pred_region
        _
      $region20: #{tpu_custom_call.1} parent=11 // pred_fallthru
        _
      // Predicated region
      $region21: #{tpu_custom_call.1} parent=11 // pred_check
        %p258 = pneg %p106
      $region22: #{tpu_custom_call.1} parent=11 // pred_check_branch
        %260 = sbr.rel (%p258) target = $region24
      $region23: #{tpu_custom_call.1} parent=11 // pred_region
        _
      $region24: #{tpu_custom_call.1} parent=11 // pred_fallthru
        _
      // Predicated region
      $region25: #{tpu_custom_call.1} parent=11 // pred_check
        %p261 = pneg %p127
      $region26: #{tpu_custom_call.1} parent=11 // pred_check_branch
        %263 = sbr.rel (%p261) target = $region28
      $region27: #{tpu_custom_call.1} parent=11 // pred_region
        _
      $region28: #{tpu_custom_call.1} parent=11 // pred_fallthru
        _
      // Predicated region
      $region29: #{tpu_custom_call.1} parent=11 // pred_check
        %p264 = pneg %p148
      $region30: #{tpu_custom_call.1} parent=11 // pred_check_branch
        %266 = sbr.rel (%p264) target = $region32
      $region31: #{tpu_custom_call.1} parent=11 // pred_region
        _
      $region32: #{tpu_custom_call.1} parent=11 // pred_fallthru
        _
      // Predicated region
      $region33: #{tpu_custom_call.1} parent=11 // pred_check
        %p267 = pneg %p169
      $region34: #{tpu_custom_call.1} parent=11 // pred_check_branch
        %269 = sbr.rel (%p267) target = $region36
      $region35: #{tpu_custom_call.1} parent=11 // pred_region
        _
      $region36: #{tpu_custom_call.1} parent=11 // pred_fallthru
        _
      // Predicated region
      $region37: #{tpu_custom_call.1} parent=11 // pred_check
        %p270 = pneg %p190
      $region38: #{tpu_custom_call.1} parent=11 // pred_check_branch
        %272 = sbr.rel (%p270) target = $region40
      $region39: #{tpu_custom_call.1} parent=11 // pred_region
        _
      $region40: #{tpu_custom_call.1} parent=11 // pred_fallthru
        _
      // Predicated region
      $region41: #{tpu_custom_call.1} parent=11 // pred_check
        %p273 = pneg %p211
      $region42: #{tpu_custom_call.1} parent=11 // pred_check_branch
        %275 = sbr.rel (%p273) target = $region44
      $region43: #{tpu_custom_call.1} parent=11 // pred_region
        _
      $region44: #{tpu_custom_call.1} parent=11 // pred_fallthru
        _
    $region12: #{tpu_custom_call.1} parent=5 // pred_fallthru
      _
    %p276 = scmp.lt.s32.totalorder %s17, 2
    // Predicated region
    $region45: #{tpu_custom_call.1} parent=5 // pred_check
      %p277 = pneg %p276
    $region46: #{tpu_custom_call.1} parent=5 // pred_check_branch
      %279 = sbr.rel (%p277) target = $region48
    $region47: #{tpu_custom_call.1} parent=5 // pred_region
      // Predicated region
      $region49: #{tpu_custom_call.1} parent=47 // pred_check
        %p280 = pneg %p37
      $region50: #{tpu_custom_call.1} parent=47 // pred_check_branch
        %282 = sbr.rel (%p280) target = $region52
      $region51: #{tpu_custom_call.1} parent=47 // pred_region
        %p283 = scmp.lt.s32.totalorder %s17, 1
        %s284 = scalar_select %p283, %s17, 1
        %s285 = smul.addr %s284, 4
        %s286 = scalar_lea.vmem %s0, %s285
      $region52: #{tpu_custom_call.1} parent=47 // pred_fallthru
        _
    $region48: #{tpu_custom_call.1} parent=5 // pred_fallthru
      _
    %p287 = scmp.le.s32.totalorder 1, %s17
    %p288 = scmp.lt.s32.totalorder %s17, 3
    %p289 = pnand %p287, %p288
    %p290 = pneg %p289
    // Predicated region
    $region53: #{tpu_custom_call.1} parent=5 // pred_check
      _
    $region54: #{tpu_custom_call.1} parent=5 // pred_check_branch
      %292 = sbr.rel (%p289) target = $region56
    $region55: #{tpu_custom_call.1} parent=5 // pred_region
      %s293 = ssub.s32 %s17, 1
      %p294 = scmp.lt.s32.totalorder %s22, 1
      %s295 = scalar_select %p294, %s22, 1
      %s296 = smul.addr %s295, 4
      %s297 = scalar_lea.vmem %s0, %s296
      %p298 = pneg %p43
      %p299 = pneg %p40
      %p300 = pneg %p64
      %p301 = pneg %p61
      %p302 = pneg %p85
      %p303 = pneg %p82
      %p304 = pneg %p106
      %p305 = pneg %p103
      %p306 = pneg %p127
      %p307 = pneg %p124
      %p308 = pneg %p148
      %p309 = pneg %p145
      %p310 = pneg %p169
      %p311 = pneg %p166
      %p312 = pneg %p190
      %p313 = pneg %p187
      %p314 = pneg %p211
      %p315 = pneg %p208
      %p316 = pneg %p237
      %p317 = pneg %p234
      %p318 = scmp.lt.s32.totalorder %s22, 1
      %s319 = scalar_select %p318, %s22, 1
      %s320 = smul.addr %s319, 8
      %s321 = scalar_lea.vmem %s9, %s320
      %p322 = scmp.lt.s32.totalorder %s22, 1
      %s323 = scalar_select %p322, %s22, 1
      %s324 = smul.addr %s323, 4
      %s325 = scalar_lea.vmem %s0, %s324
      %p326 = scmp.lt.s32.totalorder %s22, 1
      %s327 = scalar_select %p326, %s22, 1
      %s328 = smul.addr %s327, 8
      %s329 = scalar_lea.vmem %s9, %s328
      %v331 = vld [vmem:[%s325] sm:$0xf]
      %v332 = vld [vmem:[%s1] sm:$0xf]
      %v333 = vld [vmem:[%s1 + $0x4] sm:$0xf]
      %v334 = vld [vmem:[%s1 + $0x8] sm:$0xf]
      %v335 = vld [vmem:[%s1 + $0xc] sm:$0xf]
      %v336 = vld [vmem:[%s1 + $0x10] sm:$0xf]
      %v337 = vld [vmem:[%s1 + $0x14] sm:$0xf]
      %v338 = vld [vmem:[%s1 + $0x18] sm:$0xf]
      %v339 = vld [vmem:[%s1 + $0x1c] sm:$0xf]
      %v340 = vld [vmem:[%s1 + $0x20] sm:$0xf]
      %v341 = vld [vmem:[%s1 + $0x24] sm:$0xf]
      %v342 = vld [vmem:[%s1 + $0x28] sm:$0xf]
      %v343 = vld [vmem:[%s1 + $0x2c] sm:$0xf]
      %v344 = vld [vmem:[%s1 + $0x30] sm:$0xf]
      %v345 = vld [vmem:[%s1 + $0x34] sm:$0xf]
      %v346 = vld [vmem:[%s1 + $0x38] sm:$0xf]
      %v347 = vld [vmem:[%s1 + $0x3c] sm:$0xf]
      %v348 = vld [vmem:[%s2] sm:$0x1]
      %v350 = vlaneseq
      %v351 = vshrl.u32 %v350, 7
      %v352 = vsub.s32 0, %v351
      %v353 = vrot.slane %v348, %v352
      %v371 = vunpack.c.l.b16 %v332
      %v372 = vunpack.c.l.b16 %v333
      %v373 = vunpack.c.l.b16 %v334
      %v374 = vunpack.c.l.b16 %v335
      %v375 = vunpack.c.l.b16 %v336
      %v376 = vunpack.c.l.b16 %v337
      %v377 = vunpack.c.l.b16 %v338
      %v378 = vunpack.c.l.b16 %v339
      %v379 = vunpack.c.l.b16 %v340
      %v380 = vunpack.c.l.b16 %v341
      %v381 = vunpack.c.l.b16 %v342
      %v382 = vunpack.c.l.b16 %v343
      %v383 = vunpack.c.l.b16 %v344
      %v384 = vunpack.c.l.b16 %v345
      %v385 = vunpack.c.l.b16 %v346
      %v386 = vunpack.c.l.b16 %v347
      %v387 = vpack.c.b16 %v372, %v371
      %v388 = vpack.c.b16 %v374, %v373
      %v389 = vpack.c.b16 %v376, %v375
      %v390 = vpack.c.b16 %v378, %v377
      %v391 = vpack.c.b16 %v380, %v379
      %v392 = vpack.c.b16 %v382, %v381
      %v393 = vpack.c.b16 %v384, %v383
      %v394 = vpack.c.b16 %v386, %v385
      %403 = vmatprep.subr.bf16.mxu0 0
      %404 = vmatpush1.bf16.msra.mxu0 %v387
      %405 = vmatprep.subr.bf16.mxu0 0
      %406 = vmatpush1.bf16.msra.mxu0 %v388
      %407 = vmatprep.subr.bf16.mxu0 0
      %408 = vmatpush1.bf16.msra.mxu0 %v389
      %409 = vmatprep.subr.bf16.mxu0 0
      %410 = vmatpush1.bf16.msra.mxu0 %v390
      %411 = vmatprep.subr.bf16.mxu0 0
      %412 = vmatpush1.bf16.msra.mxu0 %v391
      %413 = vmatprep.subr.bf16.mxu0 0
      %414 = vmatpush1.bf16.msra.mxu0 %v392
      %415 = vmatprep.subr.bf16.mxu0 0
      %416 = vmatpush1.bf16.msra.mxu0 %v393
      %417 = vmatprep.subr.bf16.mxu0 0
      %418 = vmatpush1.bf16.msra.mxu0 %v394
      %419 = vmatprep.subr.bf16.mxu0 0
      %420 = vmatpush1.bf16.msra.mxu0 0
      %421 = vmatprep.subr.bf16.mxu0 0
      %422 = vmatpush1.bf16.msra.mxu0 0
      %423 = vmatprep.subr.bf16.mxu0 0
      %424 = vmatpush1.bf16.msra.mxu0 0
      %425 = vmatprep.subr.bf16.mxu0 0
      %426 = vmatpush1.bf16.msra.mxu0 0
      %427 = vmatprep.subr.bf16.mxu0 0
      %428 = vmatpush1.bf16.msra.mxu0 0
      %429 = vmatprep.subr.bf16.mxu0 0
      %430 = vmatpush1.bf16.msra.mxu0 0
      %431 = vmatprep.subr.bf16.mxu0 0
      %432 = vmatpush1.bf16.msra.mxu0 0
      %433 = vmatprep.subr.bf16.mxu0 0
      %434 = vmatpush1.bf16.msra.mxu0 0
      %435 = vmatprep.mubr.bf16.mxu0 0
      %436 = vmatmul.mubr.bf16.gmra.mrb[0].mxu0 %v331
      %v437 = vpop.f32.mrb[0].mxu0
      %v438 = vadd.f32 %v353, %v437
      %v439 = vpop.f32.mrb[0].mxu0
      %v440 = vpop.f32.mrb[0].mxu0
      %v441 = vpop.f32.mrb[0].mxu0
      %442 = vdwg.mxu0
      %v443 = vmax.f32 %v438, 0.0
      %v444 = vpack.c.bf16 %v443, %v443
      %v445 = vld [vmem:[%s3] sm:$0xf]
      %v446 = vld [vmem:[%s3 + $0x4] sm:$0xf]
      %v447 = vld [vmem:[%s3 + $0x8] sm:$0xf]
      %v448 = vld [vmem:[%s3 + $0xc] sm:$0xf]
      %v449 = vld [vmem:[%s3 + $0x10] sm:$0xf]
      %v450 = vld [vmem:[%s3 + $0x14] sm:$0xf]
      %v451 = vld [vmem:[%s3 + $0x18] sm:$0xf]
      %v452 = vld [vmem:[%s4] sm:$0x1]
      %v454 = vlaneseq
      %v455 = vshrl.u32 %v454, 7
      %v456 = vsub.s32 0, %v455
      %v457 = vrot.slane %v452, %v456
      %v466 = vunpack.c.l.b16 %v445
      %v467 = vunpack.c.l.b16 %v446
      %v468 = vunpack.c.l.b16 %v447
      %v469 = vunpack.c.l.b16 %v448
      %v470 = vunpack.c.l.b16 %v449
      %v471 = vunpack.c.l.b16 %v450
      %v472 = vunpack.c.l.b16 %v451
      %v473 = vpack.c.b16 %v467, %v466
      %v474 = vpack.c.b16 %v469, %v468
      %v475 = vpack.c.b16 %v471, %v470
      %v476 = vpack.c.b16 %v472, %v472
      %vm480 = vcmask 457728
      %v482 = vsel %vm480, %v444, 0
      %vm484 = vcmask 1043456
      %v486 = vsel %vm484, %v476, 0
      %488 = vmatprep.subr.bf16.mxu0 0
      %489 = vmatpush1.bf16.msra.mxu0 %v473
      %490 = vmatprep.subr.bf16.mxu0 0
      %491 = vmatpush1.bf16.msra.mxu0 %v474
      %492 = vmatprep.subr.bf16.mxu0 0
      %493 = vmatpush1.bf16.msra.mxu0 %v475
      %494 = vmatprep.subr.bf16.mxu0 0
      %495 = vmatpush1.bf16.msra.mxu0 %v486
      %496 = vmatprep.subr.bf16.mxu0 0
      %497 = vmatpush1.bf16.msra.mxu0 0
      %498 = vmatprep.subr.bf16.mxu0 0
      %499 = vmatpush1.bf16.msra.mxu0 0
      %500 = vmatprep.subr.bf16.mxu0 0
      %501 = vmatpush1.bf16.msra.mxu0 0
      %502 = vmatprep.subr.bf16.mxu0 0
      %503 = vmatpush1.bf16.msra.mxu0 0
      %504 = vmatprep.subr.bf16.mxu0 0
      %505 = vmatpush1.bf16.msra.mxu0 0
      %506 = vmatprep.subr.bf16.mxu0 0
      %507 = vmatpush1.bf16.msra.mxu0 0
      %508 = vmatprep.subr.bf16.mxu0 0
      %509 = vmatpush1.bf16.msra.mxu0 0
      %510 = vmatprep.subr.bf16.mxu0 0
      %511 = vmatpush1.bf16.msra.mxu0 0
      %512 = vmatprep.subr.bf16.mxu0 0
      %513 = vmatpush1.bf16.msra.mxu0 0
      %514 = vmatprep.subr.bf16.mxu0 0
      %515 = vmatpush1.bf16.msra.mxu0 0
      %516 = vmatprep.subr.bf16.mxu0 0
      %517 = vmatpush1.bf16.msra.mxu0 0
      %518 = vmatprep.subr.bf16.mxu0 0
      %519 = vmatpush1.bf16.msra.mxu0 0
      %520 = vmatprep.mubr.bf16.mxu0 0
      %521 = vmatmul.mubr.bf16.gmra.mrb[0].mxu0 %v482
      %v522 = vpop.f32.mrb[0].mxu0
      %v523 = vadd.f32 %v457, %v522
      %v524 = vpop.f32.mrb[0].mxu0
      %v525 = vpop.f32.mrb[0].mxu0
      %v526 = vpop.f32.mrb[0].mxu0
      %527 = vdwg.mxu0
      %v528 = vmax.f32 %v523, 0.0
      %v529 = vpack.c.bf16 %v528, %v528
      %v530 = vld [vmem:[%s5] sm:$0xf]
      %v531 = vld [vmem:[%s5 + $0x4] sm:$0xf]
      %v532 = vld [vmem:[%s5 + $0x8] sm:$0xf]
      %v533 = vld [vmem:[%s5 + $0xc] sm:$0xf]
      %v534 = vld [vmem:[%s5 + $0x10] sm:$0xf]
      %v535 = vld [vmem:[%s5 + $0x14] sm:$0xf]
      %v536 = vld [vmem:[%s5 + $0x18] sm:$0xf]
      %v537 = vld [vmem:[%s6] sm:$0x1]
      %v539 = vlaneseq
      %v540 = vshrl.u32 %v539, 7
      %v541 = vsub.s32 0, %v540
      %v542 = vrot.slane %v537, %v541
      %v551 = vunpack.c.l.b16 %v530
      %v552 = vunpack.c.l.b16 %v531
      %v553 = vunpack.c.l.b16 %v532
      %v554 = vunpack.c.l.b16 %v533
      %v555 = vunpack.c.l.b16 %v534
      %v556 = vunpack.c.l.b16 %v535
      %v557 = vunpack.c.l.b16 %v536
      %v558 = vpack.c.b16 %v552, %v551
      %v559 = vpack.c.b16 %v554, %v553
      %v560 = vpack.c.b16 %v556, %v555
      %v561 = vpack.c.b16 %v557, %v557
      %v566 = vsel %vm480, %v529, 0
      %v569 = vsel %vm484, %v561, 0
      %571 = vmatprep.subr.bf16.mxu0 0
      %572 = vmatpush1.bf16.msra.mxu0 %v558
      %573 = vmatprep.subr.bf16.mxu0 0
      %574 = vmatpush1.bf16.msra.mxu0 %v559
      %575 = vmatprep.subr.bf16.mxu0 0
      %576 = vmatpush1.bf16.msra.mxu0 %v560
      %577 = vmatprep.subr.bf16.mxu0 0
      %578 = vmatpush1.bf16.msra.mxu0 %v569
      %579 = vmatprep.subr.bf16.mxu0 0
      %580 = vmatpush1.bf16.msra.mxu0 0
      %581 = vmatprep.subr.bf16.mxu0 0
      %582 = vmatpush1.bf16.msra.mxu0 0
      %583 = vmatprep.subr.bf16.mxu0 0
      %584 = vmatpush1.bf16.msra.mxu0 0
      %585 = vmatprep.subr.bf16.mxu0 0
      %586 = vmatpush1.bf16.msra.mxu0 0
      %587 = vmatprep.subr.bf16.mxu0 0
      %588 = vmatpush1.bf16.msra.mxu0 0
      %589 = vmatprep.subr.bf16.mxu0 0
      %590 = vmatpush1.bf16.msra.mxu0 0
      %591 = vmatprep.subr.bf16.mxu0 0
      %592 = vmatpush1.bf16.msra.mxu0 0
      %593 = vmatprep.subr.bf16.mxu0 0
      %594 = vmatpush1.bf16.msra.mxu0 0
      %595 = vmatprep.subr.bf16.mxu0 0
      %596 = vmatpush1.bf16.msra.mxu0 0
      %597 = vmatprep.subr.bf16.mxu0 0
      %598 = vmatpush1.bf16.msra.mxu0 0
      %599 = vmatprep.subr.bf16.mxu0 0
      %600 = vmatpush1.bf16.msra.mxu0 0
      %601 = vmatprep.subr.bf16.mxu0 0
      %602 = vmatpush1.bf16.msra.mxu0 0
      %603 = vmatprep.mubr.bf16.mxu0 0
      %604 = vmatmul.mubr.bf16.gmra.mrb[0].mxu0 %v566
      %v605 = vpop.f32.mrb[0].mxu0
      %v606 = vadd.f32 %v542, %v605
      %v607 = vpop.f32.mrb[0].mxu0
      %v608 = vpop.f32.mrb[0].mxu0
      %v609 = vpop.f32.mrb[0].mxu0
      %610 = vdwg.mxu0
      %v611 = vmax.f32 %v606, 0.0
      %v612 = vld [vmem:[%s7] sm:$0x1]
      %v614 = vlaneseq
      %v615 = vshrl.u32 %v614, 7
      %v616 = vsub.s32 0, %v615
      %v617 = vrot.slane %v612, %v616
      %v619 = vmul.f32 %v611, %v617
      %vm620 = vcmask 195584
      %v621 = vsel %vm620, %v619, 0.0
      %622 = vadd.xlane.f32.xlu0 %v621
      %v623 = vpop.xlane.xlu0 %622
      %v624 = vld [vmem:[#allocation2] sm:$0x1]
      %v626 = vlaneseq
      %v627 = vshrl.u32 %v626, 7
      %v628 = vsub.s32 0, %v627
      %v629 = vrot.slane %v624, %v628
      %v631 = vadd.f32 %v623, %v629
      %vm632 = vcmask 7168
      %633 = vst.msk [vmem:[%s329] sm:$0xff] %vm632, %v631
      %p634 = scmp.lt.s32.totalorder %s22, 1
      %s635 = scalar_select %p634, %s22, 1
      %s636 = smul.addr %s635, 8
      %s637 = scalar_lea.vmem %s9, %s636
      // Predicated region
      $region57: #{tpu_custom_call.1} parent=55 // pred_check
        %p638 = pneg %p234
      $region58: #{tpu_custom_call.1} parent=55 // pred_check_branch
        %640 = sbr.rel (%p638) target = $region60
      $region59: #{tpu_custom_call.1} parent=55 // pred_region
        _
      $region60: #{tpu_custom_call.1} parent=55 // pred_fallthru
        _
    $region56: #{tpu_custom_call.1} parent=5 // pred_fallthru
      _
    %p641 = scmp.le.s32.totalorder 2, %s17
    // Predicated region
    $region61: #{tpu_custom_call.1} parent=5 // pred_check
      %p642 = pneg %p641
    $region62: #{tpu_custom_call.1} parent=5 // pred_check_branch
      %644 = sbr.rel (%p642) target = $region64
    $region63: #{tpu_custom_call.1} parent=5 // pred_region
      %s645 = ssub.s32 %s17, 2
      // Predicated region
      $region65: #{tpu_custom_call.1} parent=63 // pred_check
        %p646 = pneg %p240
      $region66: #{tpu_custom_call.1} parent=63 // pred_check_branch
        %648 = sbr.rel (%p646) target = $region68
      $region67: #{tpu_custom_call.1} parent=63 // pred_region
        %p649 = scmp.lt.s32.totalorder %s23, 1
        %s650 = scalar_select %p649, %s23, 1
        %s651 = smul.addr %s650, 8
        %s652 = scalar_lea.vmem %s9, %s651
      $region68: #{tpu_custom_call.1} parent=63 // pred_fallthru
        _
    $region64: #{tpu_custom_call.1} parent=5 // pred_fallthru
      _
  $region6: #{tpu_custom_call.1} parent=0 // loop_footer
    %s21 = sadd.s32 1, %s17
  $region7: #{tpu_custom_call.1} parent=0 // loop_footer_branch
    %16 = sbr.rel target = $region3
  $region8: #{tpu_custom_call.1} parent=0 // loop_exit
    _

</llo_original>
